<compile_context>
chip_gen: v6e
topology: v6e:2x2x1
jax: 0.10.0
libtpu: 0.0.40
codegen_flags: <defaults>
</compile_context>

<pallas_src>
import functools

import jax
import jax.numpy as jnp
from jax.experimental import pallas as pl
from jax.experimental.pallas import tpu as pltpu


_VMEM_SOFT_CAP = 32 * 1024 * 1024        # conservative scoped-VMEM budget (all gens)


def _round_up(x, m):
    return -(-x // m) * m


def _block_vmem_bytes(bs, c, tile, p_item, t_item):
    """Padded, double-buffered VMEM footprint of one grid step."""
    pack_p = max(8, 32 // p_item)                      # sublane packing: f32->8, bf16->16
    pack_t = max(8, 32 // t_item)
    pred_blk = 2 * bs * _round_up(c, pack_p) * tile * p_item
    targ_blk = 2 * _round_up(bs, pack_t) * tile * t_item
    accs = 3 * _round_up(bs, 8) * tile * 4
    out_blk = 2 * _round_up(bs, 8) * 128 * 4
    return pred_blk + targ_blk + accs + out_blk


def _choose_tile(hw, bs, c, p_item, t_item, max_tile):
    def fits(t):
        return _block_vmem_bytes(bs, c, t, p_item, t_item) <= _VMEM_SOFT_CAP

    if hw <= max_tile:
        tile = hw                                       # full extent is always legal
    else:
        cap = (max_tile // 128) * 128
        # Prefer the largest divisor of hw that is a multiple of 128 (tail mask
        # compiles away), unless it is much smaller than the cap.
        div = next((t for t in range(cap, 127, -128) if hw % t == 0), None)
        tile = div if (div is not None and div >= cap // 2) else cap
    while tile > 256 and not fits(tile):
        tile = max(256, ((tile // 2) // 128) * 128)
    return tile


def _topo_dice_kernel(pred_ref, targ_ref, out_ref, a_acc, b_acc, c_acc, *,
                      use_sigmoid, hw, tile, k_per, n_ch, needs_mask):
    # pred_ref: (bs, c, tile), targ_ref: (bs, tile), out_ref: (1, bs, 3)
    p = pl.program_id(0)          # parallel chunk of the HW axis (megacore on v7x)
    k = pl.program_id(1)          # reduction step within the chunk

    @pl.when(k == 0)
    def _():
        a_acc[...] = jnp.zeros_like(a_acc)
        b_acc[...] = jnp.zeros_like(b_acc)
        c_acc[...] = jnp.zeros_like(c_acc)

    # Channel max in the input's native dtype (exact), unrolled over the small
    # static channel count: plain vld + vmaximum.
    pm = pred_ref[:, 0, :]
    for ch in range(1, n_ch):
        pm = jnp.maximum(pm, pred_ref[:, ch, :])
    pm = pm.astype(jnp.float32)                               # (bs, tile)
    if use_sigmoid:
        # sigmoid is strictly monotonic: max(sigmoid(x)) == sigmoid(max(x)),
        # so applying it after the max cuts EUP work by the channel count.
        pm = jax.nn.sigmoid(pm)
    t = targ_ref[...].astype(jnp.float32)                     # (bs, tile)

    if needs_mask:
        # Only compiled in when hw % tile != 0 (padded tail block).
        col = (p * k_per + k) * tile + jax.lax.broadcasted_iota(jnp.int32, pm.shape, 1)
        valid = col < hw
        pm = jnp.where(valid, pm, 0.0)
        t = jnp.where(valid, t, 0.0)

    # Deferred reduction: elementwise accumulation only (VALU, hides under DMA);
    # the cross-lane sums happen once, in the finalize below.
    a_acc[...] += pm * t
    b_acc[...] += pm * pm
    c_acc[...] += t * t

    @pl.when(k == pl.num_programs(1) - 1)
    def _():
        a = jnp.sum(a_acc[...], axis=1, keepdims=True)        # (bs, 1)
        b = jnp.sum(b_acc[...], axis=1, keepdims=True)
        c = jnp.sum(c_acc[...], axis=1, keepdims=True)
        out_ref[...] = jnp.concatenate([a, b, c], axis=1)[None, :, :]


def topology_dice_loss(pred, target, use_sigmoid=True, eps=1e-3, max_tile_hw=8192):
    """pred: (bs, c, h, w); target: (bs, 1, th, tw). Returns scalar loss."""
    bs, c, h, w = pred.shape
    _, tc, th, tw = target.shape
    assert tc == 1, "target is expected to have a single channel"
    hw = h * w

    # Nearest-neighbor resize of the target to (h, w), matching PyTorch
    # F.interpolate(mode='nearest'): src_idx = floor(dst_idx * in/out).
    # Kept in its native (possibly narrow) dtype; skipped when shapes match.
    # TODO(synk): data-dependent gather kept in plain JAX (not a Pallas hot path).
    if (th, tw) == (h, w):
        t_resized = target[:, 0]
    else:
        rows = (jnp.arange(h) * th) // h
        cols = (jnp.arange(w) * tw) // w
        t_resized = target[:, 0, rows[:, None], cols[None, :]]        # (bs, h, w)

    pred_r = pred.reshape(bs, c, hw)           # native dtype, contiguous reshape
    targ_r = t_resized.reshape(bs, hw)

    p_item = pred_r.dtype.itemsize
    t_item = targ_r.dtype.itemsize
    tile = _choose_tile(hw, bs, c, p_item, t_item, max_tile_hw)
    needs_mask = (hw % tile) != 0
    n_blocks = pl.cdiv(hw, tile)
    n_par = 2 if (n_blocks >= 2 and n_blocks % 2 == 0) else 1   # megacore split (v7x)
    k_per = n_blocks // n_par

    kernel = functools.partial(
        _topo_dice_kernel, use_sigmoid=use_sigmoid, hw=hw, tile=tile,
        k_per=k_per, n_ch=c, needs_mask=needs_mask)

    vmem_budget = _block_vmem_bytes(bs, c, tile, p_item, t_item)
    vmem_limit = int(min(48 * 1024 * 1024, max(24 * 1024 * 1024, 2 * vmem_budget)))

    flops = bs * hw * (c - 1 + 6)                      # channel max + 3 mul + 3 add
    transcendentals = bs * hw if use_sigmoid else 0    # sigmoid after the max
    bytes_accessed = pred_r.size * p_item + targ_r.size * t_item + n_par * bs * 3 * 4

    partials = pl.pallas_call(
        kernel,
        out_shape=jax.ShapeDtypeStruct((n_par, bs, 3), jnp.float32),
        grid_spec=pltpu.PrefetchScalarGridSpec(
            num_scalar_prefetch=0,
            grid=(n_par, k_per),
            in_specs=[
                pl.BlockSpec((bs, c, tile), lambda p, k: (0, 0, p * k_per + k)),
                pl.BlockSpec((bs, tile), lambda p, k: (0, p * k_per + k)),
            ],
            out_specs=pl.BlockSpec((1, bs, 3), lambda p, k: (p, 0, 0)),
            scratch_shapes=[
                pltpu.VMEM((bs, tile), jnp.float32),   # running p_max * t
                pltpu.VMEM((bs, tile), jnp.float32),   # running p_max^2
                pltpu.VMEM((bs, tile), jnp.float32),   # running t^2
            ],
        ),
        compiler_params=pltpu.CompilerParams(
            dimension_semantics=("parallel", "arbitrary"),
            vmem_limit_bytes=vmem_limit,
        ),
        cost_estimate=pl.CostEstimate(
            flops=flops,
            transcendentals=transcendentals,
            bytes_accessed=bytes_accessed,
        ),
    )(pred_r, targ_r)

    # Tiny JAX epilogue: combine per-chunk partials and form the V-Net dice.
    sums = jnp.sum(partials, axis=0)                   # (bs, 3)
    a = sums[:, 0]
    b = sums[:, 1] + eps
    cc = sums[:, 2] + eps
    return jnp.mean(1.0 - 2.0 * a / (b + cc))


def _reference(pred, target, use_sigmoid=True, eps=1e-3):
    bs, c, h, w = pred.shape
    _, _, th, tw = target.shape
    p = jax.nn.sigmoid(pred.astype(jnp.float32)) if use_sigmoid else pred.astype(jnp.float32)
    p_max = jnp.max(p, axis=1)                         # sigmoid-then-max, like PyTorch
    rows = (jnp.arange(h) * th) // h
    cols = (jnp.arange(w) * tw) // w
    t = target[:, 0, rows[:, None], cols[None, :]].astype(jnp.float32)
    pf = p_max.reshape(bs, -1)
    tf = t.reshape(bs, -1)
    a = jnp.sum(pf * tf, axis=1)
    b = jnp.sum(pf * pf, axis=1) + eps
    cc = jnp.sum(tf * tf, axis=1) + eps
    return jnp.mean(1.0 - 2.0 * a / (b + cc))


if __name__ == "__main__":
    key = jax.random.PRNGKey(0)
    k1, k2 = jax.random.split(key)

    bs, c, h, w = 2, 4, 16, 16
    th, tw = 32, 32  # target at a different resolution to exercise nearest resize

    pred = jax.random.normal(k1, (bs, c, h, w), dtype=jnp.float32)
    target = (jax.random.uniform(k2, (bs, 1, th, tw)) > 0.5).astype(jnp.float32)

    loss = topology_dice_loss(pred, target, use_sigmoid=True, eps=1e-3)
    loss = jax.block_until_ready(loss)

    ref = jax.block_until_ready(_reference(pred, target, use_sigmoid=True, eps=1e-3))
    assert jnp.allclose(loss, ref, atol=1e-4, rtol=1e-4), (loss, ref)

    print("KERNEL_OK")
</pallas_src>

<mosaic_0001>
module attributes {stable_mosaic.version = 11 : i64} {
  func.func @_topo_dice_kernel(%arg0: i32, %arg1: i32, %arg2: memref<2x4x256xf32, #tpu.memory_space<vmem>>, %arg3: memref<2x256xf32, #tpu.memory_space<vmem>>, %arg4: memref<1x2x3xf32, #tpu.memory_space<vmem>>, %arg5: memref<2x256xf32, #tpu.memory_space<vmem>>, %arg6: memref<2x256xf32, #tpu.memory_space<vmem>>, %arg7: memref<2x256xf32, #tpu.memory_space<vmem>>) attributes {dimension_semantics = [#tpu.dimension_semantics<parallel>, #tpu.dimension_semantics<arbitrary>], iteration_bounds = array<i64: 1, 1>, scalar_prefetch = 0 : i64, scratch_operands = 3 : i64, tpu.core_type = #tpu.core_type<tc>, window_params = [{transform_indices = @transform_0, window_bounds = array<i64: 2, 4, 256>}, {transform_indices = @transform_1, window_bounds = array<i64: 2, 256>}, {transform_indices = @transform_2, window_bounds = array<i64: 1, 2, 3>}]} {
    %c0_i32 = arith.constant 0 : i32
    %0 = arith.cmpi eq, %arg1, %c0_i32 : i32
    %1 = arith.extui %0 : i1 to i32
    %c0_i32_0 = arith.constant 0 : i32
    %2 = arith.cmpi ne, %1, %c0_i32_0 : i32
    scf.if %2 {
      %cst_25 = arith.constant 0.000000e+00 : f32
      %35 = vector.broadcast %cst_25 : f32 to vector<2x256xf32>
      %c0_26 = arith.constant 0 : index
      %c0_27 = arith.constant 0 : index
      %36 = vector.load %arg5[%c0_26, %c0_27] : memref<2x256xf32, #tpu.memory_space<vmem>>, vector<2x256xf32>
      tpu.vector_store %arg5[%c0_26, %c0_27], %35 {strides = array<i32>} : memref<2x256xf32, #tpu.memory_space<vmem>>, vector<2x256xf32>,
      %cst_28 = arith.constant 0.000000e+00 : f32
      %37 = vector.broadcast %cst_28 : f32 to vector<2x256xf32>
      %c0_29 = arith.constant 0 : index
      %c0_30 = arith.constant 0 : index
      %38 = vector.load %arg6[%c0_29, %c0_30] : memref<2x256xf32, #tpu.memory_space<vmem>>, vector<2x256xf32>
      tpu.vector_store %arg6[%c0_29, %c0_30], %37 {strides = array<i32>} : memref<2x256xf32, #tpu.memory_space<vmem>>, vector<2x256xf32>,
      %cst_31 = arith.constant 0.000000e+00 : f32
      %39 = vector.broadcast %cst_31 : f32 to vector<2x256xf32>
      %c0_32 = arith.constant 0 : index
      %c0_33 = arith.constant 0 : index
      %40 = vector.load %arg7[%c0_32, %c0_33] : memref<2x256xf32, #tpu.memory_space<vmem>>, vector<2x256xf32>
      tpu.vector_store %arg7[%c0_32, %c0_33], %39 {strides = array<i32>} : memref<2x256xf32, #tpu.memory_space<vmem>>, vector<2x256xf32>,
    } else {
    }
    %c0 = arith.constant 0 : index
    %c0_1 = arith.constant 0 : index
    %c0_2 = arith.constant 0 : index
    %3 = vector.load %arg2[%c0, %c0_1, %c0_2] : memref<2x4x256xf32, #tpu.memory_space<vmem>>, vector<2x1x256xf32>
    %4 = vector.shape_cast %3 : vector<2x1x256xf32> to vector<2x256xf32>
    %c0_3 = arith.constant 0 : index
    %c1 = arith.constant 1 : index
    %c0_4 = arith.constant 0 : index
    %5 = vector.load %arg2[%c0_3, %c1, %c0_4] : memref<2x4x256xf32, #tpu.memory_space<vmem>>, vector<2x1x256xf32>
    %6 = vector.shape_cast %5 : vector<2x1x256xf32> to vector<2x256xf32>
    %7 = arith.maximumf %4, %6 : vector<2x256xf32>
    %c0_5 = arith.constant 0 : index
    %c2 = arith.constant 2 : index
    %c0_6 = arith.constant 0 : index
    %8 = vector.load %arg2[%c0_5, %c2, %c0_6] : memref<2x4x256xf32, #tpu.memory_space<vmem>>, vector<2x1x256xf32>
    %9 = vector.shape_cast %8 : vector<2x1x256xf32> to vector<2x256xf32>
    %10 = arith.maximumf %7, %9 : vector<2x256xf32>
    %c0_7 = arith.constant 0 : index
    %c3 = arith.constant 3 : index
    %c0_8 = arith.constant 0 : index
    %11 = vector.load %arg2[%c0_7, %c3, %c0_8] : memref<2x4x256xf32, #tpu.memory_space<vmem>>, vector<2x1x256xf32>
    %12 = vector.shape_cast %11 : vector<2x1x256xf32> to vector<2x256xf32>
    %13 = arith.maximumf %10, %12 : vector<2x256xf32>
    %14 = arith.negf %13 : vector<2x256xf32>
    %15 = math.exp %14 : vector<2x256xf32>
    %cst = arith.constant 1.000000e+00 : f32
    %16 = vector.broadcast %cst : f32 to vector<2x256xf32>
    %17 = arith.addf %16, %15 : vector<2x256xf32>
    %18 = arith.divf %16, %17 : vector<2x256xf32>
    %c0_9 = arith.constant 0 : index
    %c0_10 = arith.constant 0 : index
    %19 = vector.load %arg3[%c0_9, %c0_10] : memref<2x256xf32, #tpu.memory_space<vmem>>, vector<2x256xf32>
    %c0_11 = arith.constant 0 : index
    %c0_12 = arith.constant 0 : index
    %20 = vector.load %arg5[%c0_11, %c0_12] : memref<2x256xf32, #tpu.memory_space<vmem>>, vector<2x256xf32>
    %21 = arith.mulf %18, %19 : vector<2x256xf32>
    %22 = arith.addf %20, %21 : vector<2x256xf32>
    %c0_13 = arith.constant 0 : index
    %c0_14 = arith.constant 0 : index
    %23 = vector.load %arg5[%c0_13, %c0_14] : memref<2x256xf32, #tpu.memory_space<vmem>>, vector<2x256xf32>
    tpu.vector_store %arg5[%c0_13, %c0_14], %22 {strides = array<i32>} : memref<2x256xf32, #tpu.memory_space<vmem>>, vector<2x256xf32>,
    %c0_15 = arith.constant 0 : index
    %c0_16 = arith.constant 0 : index
    %24 = vector.load %arg6[%c0_15, %c0_16] : memref<2x256xf32, #tpu.memory_space<vmem>>, vector<2x256xf32>
    %25 = arith.mulf %18, %18 : vector<2x256xf32>
    %26 = arith.addf %24, %25 : vector<2x256xf32>
    %c0_17 = arith.constant 0 : index
    %c0_18 = arith.constant 0 : index
    %27 = vector.load %arg6[%c0_17, %c0_18] : memref<2x256xf32, #tpu.memory_space<vmem>>, vector<2x256xf32>
    tpu.vector_store %arg6[%c0_17, %c0_18], %26 {strides = array<i32>} : memref<2x256xf32, #tpu.memory_space<vmem>>, vector<2x256xf32>,
    %c0_19 = arith.constant 0 : index
    %c0_20 = arith.constant 0 : index
    %28 = vector.load %arg7[%c0_19, %c0_20] : memref<2x256xf32, #tpu.memory_space<vmem>>, vector<2x256xf32>
    %29 = arith.mulf %19, %19 : vector<2x256xf32>
    %30 = arith.addf %28, %29 : vector<2x256xf32>
    %c0_21 = arith.constant 0 : index
    %c0_22 = arith.constant 0 : index
    %31 = vector.load %arg7[%c0_21, %c0_22] : memref<2x256xf32, #tpu.memory_space<vmem>>, vector<2x256xf32>
    tpu.vector_store %arg7[%c0_21, %c0_22], %30 {strides = array<i32>} : memref<2x256xf32, #tpu.memory_space<vmem>>, vector<2x256xf32>,
    %c0_i32_23 = arith.constant 0 : i32
    %32 = arith.cmpi eq, %arg1, %c0_i32_23 : i32
    %33 = arith.extui %32 : i1 to i32
    %c0_i32_24 = arith.constant 0 : i32
    %34 = arith.cmpi ne, %33, %c0_i32_24 : i32
    scf.if %34 {
      %c0_25 = arith.constant 0 : index
      %c0_26 = arith.constant 0 : index
      %35 = vector.load %arg5[%c0_25, %c0_26] : memref<2x256xf32, #tpu.memory_space<vmem>>, vector<2x256xf32>
      %cst_27 = arith.constant dense<0.000000e+00> : vector<2xf32>
      %36 = vector.multi_reduction <add>, %35, %cst_27 [1] : vector<2x256xf32> to vector<2xf32>
      %37 = vector.shape_cast %36 : vector<2xf32> to vector<2x1xf32>
      %c0_28 = arith.constant 0 : index
      %c0_29 = arith.constant 0 : index
      %38 = vector.load %arg6[%c0_28, %c0_29] : memref<2x256xf32, #tpu.memory_space<vmem>>, vector<2x256xf32>
      %cst_30 = arith.constant dense<0.000000e+00> : vector<2xf32>
      %39 = vector.multi_reduction <add>, %38, %cst_30 [1] : vector<2x256xf32> to vector<2xf32>
      %40 = vector.shape_cast %39 : vector<2xf32> to vector<2x1xf32>
      %c0_31 = arith.constant 0 : index
      %c0_32 = arith.constant 0 : index
      %41 = vector.load %arg7[%c0_31, %c0_32] : memref<2x256xf32, #tpu.memory_space<vmem>>, vector<2x256xf32>
      %cst_33 = arith.constant dense<0.000000e+00> : vector<2xf32>
      %42 = vector.multi_reduction <add>, %41, %cst_33 [1] : vector<2x256xf32> to vector<2xf32>
      %43 = vector.shape_cast %42 : vector<2xf32> to vector<2x1xf32>
      %44 = tpu.concatenate %37, %40, %43 in 1 : vector<2x1xf32>, vector<2x1xf32>, vector<2x1xf32> -> vector<2x3xf32>
      %45 = vector.shape_cast %44 : vector<2x3xf32> to vector<1x2x3xf32>
      %c0_34 = arith.constant 0 : index
      %c0_35 = arith.constant 0 : index
      %c0_36 = arith.constant 0 : index
      %46 = vector.load %arg4[%c0_34, %c0_35, %c0_36] : memref<1x2x3xf32, #tpu.memory_space<vmem>>, vector<1x2x3xf32>
      tpu.vector_store %arg4[%c0_34, %c0_35, %c0_36], %45 {strides = array<i32>} : memref<1x2x3xf32, #tpu.memory_space<vmem>>, vector<1x2x3xf32>,
    } else {
    }
    return
  }
  func.func @transform_0(%arg0: i32, %arg1: i32) -> (i32, i32, i32) {
    %c1_i32 = arith.constant 1 : i32
    %0 = arith.muli %arg0, %c1_i32 : i32
    %1 = arith.addi %0, %arg1 : i32
    %c0_i32 = arith.constant 0 : i32
    %c0_i32_0 = arith.constant 0 : i32
    %c0_i32_1 = arith.constant 0 : i32
    return %c0_i32, %c0_i32_0, %1 : i32, i32, i32
  }
  func.func @transform_1(%arg0: i32, %arg1: i32) -> (i32, i32) {
    %c1_i32 = arith.constant 1 : i32
    %0 = arith.muli %arg0, %c1_i32 : i32
    %1 = arith.addi %0, %arg1 : i32
    %c0_i32 = arith.constant 0 : i32
    %c0_i32_0 = arith.constant 0 : i32
    return %c0_i32, %1 : i32, i32
  }
  func.func @transform_2(%arg0: i32, %arg1: i32) -> (i32, i32, i32) {
    %c0_i32 = arith.constant 0 : i32
    %c0_i32_0 = arith.constant 0 : i32
    %c0_i32_1 = arith.constant 0 : i32
    return %arg0, %c0_i32, %c0_i32_0 : i32, i32, i32
  }
}

</mosaic_0001>

<llo_original>
// kernel: tpu_custom_call.1
$region0: #{tpu_custom_call.1}
  #allocation0 [shape = 'u32[]', space=smem, size = 0x4, offset = 0x4, fixed_abs, tag = 'smem constant byte address 0x4 - core index']
  #allocation1 [shape = 'u32[144,128]{1,0:T(1,128)}', space=vmem, size = 0x12000, scoped, tag = 'internal scratch']
  #allocation2 [shape = 'f32[2,256]{1,0:T(2,128)}', space=vmem, size = 0x800, scoped, tag = 'scratch operand']
  #allocation3 [shape = 'f32[2,256]{1,0:T(2,128)}', space=vmem, size = 0x800, scoped, tag = 'scratch operand']
  #allocation4 [shape = 'f32[2,256]{1,0:T(2,128)}', space=vmem, size = 0x800, scoped, tag = 'scratch operand']
  %s0 = inlined_call_operand.hbm [shape: f32[2,4,256], index: 0, kind: input, shape index: {}]
  %s1 = inlined_call_operand.hbm [shape: f32[2,256], index: 1, kind: input, shape index: {}]
  %s2 = inlined_call_operand.hbm [shape: f32[1,2,3], index: 2, kind: output, shape index: {}]
  %s3 = sld [smem:[#allocation0]]
  $region34: #{tpu_custom_call.1} parent=0
    _
  %s5 = ssub.s32 1, %s3
  %s6 = scalar_select 0, %s5, %s3
  $region1: #{tpu_custom_call.1} parent=0
    #allocation5 [shape = 'u8[8192]{0}', space=vmem, size = 0x2000, scoped, tag = 'input window, operand 0, single buffered']
    #allocation6 [shape = 's32[1]{0}', space=sflag, size = 0x4, scoped, tag = 'scoped memory for tpu_custom_call.1']
    #allocation7 [shape = 's32[1]{0}', space=sflag, size = 0x4, scoped, tag = 'scoped memory for tpu_custom_call.1']
    #allocation8 [shape = 'u8[2048]{0}', space=vmem, size = 0x800, scoped, tag = 'input window, operand 1, single buffered']
    #allocation9 [shape = 's32[1]{0}', space=sflag, size = 0x4, scoped, tag = 'scoped memory for tpu_custom_call.1']
    #allocation10 [shape = 'u8[1024]{0}', space=vmem, size = 0x400, scoped, tag = 'output window, operand 0, single buffered']
    %7 = vsyncpa [#allocation6], 0
    %8 = vsyncpa [#allocation9], 0
    %9 = vsyncpa [#allocation7], 0
    // Predicated region
    $region2: #{tpu_custom_call.1} parent=1 // pred_check
      _
    $region3: #{tpu_custom_call.1} parent=1 // pred_check_branch
      %11 = sbr.rel (0) target = $region5
    $region4: #{tpu_custom_call.1} parent=1 // pred_region
      %s12 = sadd.s32 0, 0
      %s13 = smul.u32 2, %s12
      %s15 = ssub.s32 256, 256
      %16 = vsyncadd [#allocation6], %s15
      %s17 = smul.addr %s13, 64
      %s18 = scalar_lea.hbm %s0, %s17
      %s19 = sshll.u32 [#allocation5], 4
      %s20 = int_to_ptr.vmem [resolvable:$true] %s19
      %25 = dma.hbm_to_vmem [thread:$0]  %s18, 256, %s20, [#allocation6], 128, 128, 8
    $region5: #{tpu_custom_call.1} parent=1 // pred_fallthru
      _
    // Predicated region
    $region6: #{tpu_custom_call.1} parent=1 // pred_check
      _
    $region7: #{tpu_custom_call.1} parent=1 // pred_check_branch
      %27 = sbr.rel (0) target = $region9
    $region8: #{tpu_custom_call.1} parent=1 // pred_region
      %s28 = sadd.s32 0, 0
      %s29 = smul.u32 2, %s28
      %s31 = ssub.s32 64, 64
      %32 = vsyncadd [#allocation9], %s31
      %s33 = smul.addr %s29, 32
      %s34 = scalar_lea.hbm %s1, %s33
      %s36 = sshll.u32 [#allocation8], 4
      %s37 = int_to_ptr.vmem [resolvable:$true] %s36
      %39 = dma.hbm_to_vmem [thread:$0]  %s34, 64, %s37, [#allocation9]
    $region9: #{tpu_custom_call.1} parent=1 // pred_fallthru
      _
    // Predicated region
    $region10: #{tpu_custom_call.1} parent=1 // pred_check
      _
    $region11: #{tpu_custom_call.1} parent=1 // pred_check_branch
      %41 = sbr.rel (0) target = $region13
    $region12: #{tpu_custom_call.1} parent=1 // pred_region
      %42 = dma.done [#allocation6], 256
    $region13: #{tpu_custom_call.1} parent=1 // pred_fallthru
      _
    // Predicated region
    $region14: #{tpu_custom_call.1} parent=1 // pred_check
      _
    $region15: #{tpu_custom_call.1} parent=1 // pred_check_branch
      %44 = sbr.rel (0) target = $region17
    $region16: #{tpu_custom_call.1} parent=1 // pred_region
      %45 = dma.done [#allocation9], 64
    $region17: #{tpu_custom_call.1} parent=1 // pred_fallthru
      _
    %s46 = sadd.s32 0, 0
    %s47 = smul.u32 2, %s46
    %s48 = sadd.s32 0, 0
    %s49 = smul.u32 2, %s48
    %p50 = scmp.eq.s32.totalorder 0, 0
    // Predicated region
    $region18: #{tpu_custom_call.1} parent=1 // pred_check
      %p51 = pneg %p50
    $region19: #{tpu_custom_call.1} parent=1 // pred_check_branch
      %53 = sbr.rel (%p51) target = $region21
    $region20: #{tpu_custom_call.1} parent=1 // pred_region
      %54 = vst [vmem:[#allocation2] sm:$0xf] 0.0
      %55 = vst [vmem:[#allocation3] sm:$0xf] 0.0
      %56 = vst [vmem:[#allocation4] sm:$0xf] 0.0
    $region21: #{tpu_custom_call.1} parent=1 // pred_fallthru
      _
    %v57 = vld [vmem:[#allocation5] ss:$4 sm:$0x3]
    %s58 = scalar_lea.vmem [#allocation5], 8
    %v59 = vld [vmem:[%s58] ss:$4 sm:$0x3]
    %s60 = scalar_lea.vmem [#allocation5], 1
    %v61 = vld [vmem:[%s60] ss:$4 sm:$0x3]
    %s62 = scalar_lea.vmem [#allocation5], 9
    %v63 = vld [vmem:[%s62] ss:$4 sm:$0x3]
    %v64 = vmax.f32 %v57, %v61
    %v65 = vmax.f32 %v59, %v63
    %s66 = scalar_lea.vmem [#allocation5], 2
    %v67 = vld [vmem:[%s66] ss:$4 sm:$0x3]
    %s68 = scalar_lea.vmem [#allocation5], 10
    %v69 = vld [vmem:[%s68] ss:$4 sm:$0x3]
    %v70 = vmax.f32 %v64, %v67
    %v71 = vmax.f32 %v65, %v69
    %s72 = scalar_lea.vmem [#allocation5], 3
    %v73 = vld [vmem:[%s72] ss:$4 sm:$0x3]
    %s74 = scalar_lea.vmem [#allocation5], 11
    %v75 = vld [vmem:[%s74] ss:$4 sm:$0x3]
    %v76 = vmax.f32 %v70, %v73
    %v77 = vmax.f32 %v71, %v75
    %v78 = vxor.u32 %v76, 2147483648
    %v79 = vxor.u32 %v77, 2147483648
    %v80 = vmul.f32 %v78, 1.442695
    %v81 = vpow.pop %v80
    %v82 = vmul.f32 %v79, 1.442695
    %v83 = vpow.pop %v82
    %v84 = vadd.f32 %v81, 1.0
    %v85 = vadd.f32 %v83, 1.0
    %v86 = vrcp.pop %v84
    %v87 = vmul.f32 1.0, %v86
    %v88 = vrcp.pop %v85
    %v89 = vmul.f32 1.0, %v88
    %v90 = vld [vmem:[#allocation8] sm:$0xf]
    %v91 = vld [vmem:[#allocation2] sm:$0xf]
    %v94 = vunpack.c.l.s4 1966171168
    %v95 = vunpack.c.0.s8 %v94
    %v96 = vlaneseq
    %v97 = vshrl.u32 %v96, 7
    %v98 = vsub.s32 %v95, %v97
    %v99 = vrot.slane %v90, %v98
    %v100 = vcombine.high %v99, %v99
    %v103 = vmul.f32 %v87, %v99
    %v104 = vmul.f32 %v89, %v100
    %v107 = vcombine.low %v103, %v104
    %v109 = vunpack.c.l.s4 1935823168
    %v110 = vunpack.c.0.s8 %v109
    %v111 = vlaneseq
    %v112 = vshrl.u32 %v111, 7
    %v113 = vsub.s32 %v110, %v112
    %v114 = vrot.slane %v107, %v113
    %v116 = vadd.f32 %v91, %v114
    %117 = vst [vmem:[#allocation2] sm:$0xf] %v116
    %v118 = vld [vmem:[#allocation3] sm:$0xf]
    %v119 = vmul.f32 %v87, %v87
    %v120 = vmul.f32 %v89, %v89
    %v123 = vcombine.low %v119, %v120
    %v125 = vunpack.c.l.s4 1935823168
    %v126 = vunpack.c.0.s8 %v125
    %v127 = vlaneseq
    %v128 = vshrl.u32 %v127, 7
    %v129 = vsub.s32 %v126, %v128
    %v130 = vrot.slane %v123, %v129
    %v132 = vadd.f32 %v118, %v130
    %133 = vst [vmem:[#allocation3] sm:$0xf] %v132
    %v134 = vld [vmem:[#allocation4] sm:$0xf]
    %v135 = vmul.f32 %v90, %v90
    %v136 = vadd.f32 %v134, %v135
    %137 = vst [vmem:[#allocation4] sm:$0xf] %v136
    // Predicated region
    $region22: #{tpu_custom_call.1} parent=1 // pred_check
      %p138 = pneg %p50
    $region23: #{tpu_custom_call.1} parent=1 // pred_check_branch
      %140 = sbr.rel (%p138) target = $region25
    $region24: #{tpu_custom_call.1} parent=1 // pred_region
      %v141 = vld [vmem:[#allocation2] sm:$0xf]
      %v144 = vunpack.c.l.s4 1983009808
      %v145 = vunpack.c.0.s8 %v144
      %v146 = vlaneseq
      %v147 = vshrl.u32 %v146, 7
      %v148 = vsub.s32 %v145, %v147
      %v149 = vrot.slane %v141, %v148
      %v150 = vcombine.high %v149, %v149
      %vm153 = vcmask 1041408
      %v154 = vsel %vm153, %v149, 0.0
      %v155 = vsel %vm153, %v150, 0.0
      %v156 = vadd.f32 %v154, %v155
      %157 = vadd.xlane.f32.xlu0 %v156
      %v158 = vpop.xlane.xlu0 %157
      %v159 = vld [vmem:[#allocation3] sm:$0xf]
      %v162 = vunpack.c.l.s4 1983009808
      %v163 = vunpack.c.0.s8 %v162
      %v164 = vlaneseq
      %v165 = vshrl.u32 %v164, 7
      %v166 = vsub.s32 %v163, %v165
      %v167 = vrot.slane %v159, %v166
      %v168 = vcombine.high %v167, %v167
      %v171 = vsel %vm153, %v167, 0.0
      %v172 = vsel %vm153, %v168, 0.0
      %v173 = vadd.f32 %v171, %v172
      %174 = vadd.xlane.f32.xlu0 %v173
      %v175 = vpop.xlane.xlu0 %174
      %v176 = vld [vmem:[#allocation4] sm:$0xf]
      %v179 = vunpack.c.l.s4 1983009808
      %v180 = vunpack.c.0.s8 %v179
      %v181 = vlaneseq
      %v182 = vshrl.u32 %v181, 7
      %v183 = vsub.s32 %v180, %v182
      %v184 = vrot.slane %v176, %v183
      %v185 = vcombine.high %v184, %v184
      %v188 = vsel %vm153, %v184, 0.0
      %v189 = vsel %vm153, %v185, 0.0
      %v190 = vadd.f32 %v188, %v189
      %191 = vadd.xlane.f32.xlu0 %v190
      %v192 = vpop.xlane.xlu0 %191
      %vm193 = vcmask 7168
      %v194 = vsel %vm193, %v158, %v175
      %vm195 = vcmask 15360
      %v196 = vsel %vm195, %v194, %v192
      %vm197 = vcmask 17408
      %198 = vst.msk [vmem:[#allocation10] sm:$0x3] %vm197, %v196
    $region25: #{tpu_custom_call.1} parent=1 // pred_fallthru
      _
    // Predicated region
    $region26: #{tpu_custom_call.1} parent=1 // pred_check
      _
    $region27: #{tpu_custom_call.1} parent=1 // pred_check_branch
      %200 = sbr.rel (0) target = $region29
    $region28: #{tpu_custom_call.1} parent=1 // pred_region
      %s202 = ssub.s32 32, 32
      %203 = vsyncadd [#allocation7], %s202
      %s205 = sshll.u32 [#allocation10], 4
      %s206 = int_to_ptr.vmem [resolvable:$true] %s205
      %208 = dma.vmem_to_hbm [thread:$0]  %s206, 32, %s2, [#allocation7]
    $region29: #{tpu_custom_call.1} parent=1 // pred_fallthru
      _
    // Predicated region
    $region30: #{tpu_custom_call.1} parent=1 // pred_check
      _
    $region31: #{tpu_custom_call.1} parent=1 // pred_check_branch
      %210 = sbr.rel (0) target = $region33
    $region32: #{tpu_custom_call.1} parent=1 // pred_region
      %211 = dma.done [#allocation7], 32
    $region33: #{tpu_custom_call.1} parent=1 // pred_fallthru
      _
    %212 = vsyncpa [#allocation6], 1
    %213 = vsyncpa [#allocation9], 1
    %214 = vsyncpa [#allocation7], 1

</llo_original>
